<compile_context>
chip_gen: v6e
topology: v6e:2x2x1
jax: 0.10.0
libtpu: 0.0.40
codegen_flags: <defaults>
</compile_context>

<pallas_src>
import math

import jax
import jax.numpy as jnp
from jax.experimental import pallas as pl
from jax.experimental.pallas import tpu as pltpu

_MIB = 1024 * 1024
_MIN_ROW_BLOCKS = 8   # >=2 blocks per TensorCore on v7x, >=3 for pipeline overlap


# ---------------------------------------------------------------------------
# Kernels
# ---------------------------------------------------------------------------

def _glu_split_kernel(h_ref, t_ref, o_ref):
    # h_ref, t_ref, o_ref: (tile_m, tile_n) lane-aligned VMEM tiles.
    t = t_ref[...]
    o_ref[...] = jax.nn.sigmoid(h_ref[...].astype(jnp.float32)).astype(t.dtype) * t


def _glu_fused_kernel(x_ref, o_ref):
    # x_ref: (tile_m, 2H) tile, o_ref: (tile_m, H) tile.  Used when H % 128 != 0.
    h_dim = o_ref.shape[-1]
    h = x_ref[:, :h_dim]
    t = x_ref[:, h_dim:]
    o_ref[...] = jax.nn.sigmoid(h.astype(jnp.float32)).astype(t.dtype) * t


# ---------------------------------------------------------------------------
# Tiling helpers
# ---------------------------------------------------------------------------

def _round_up(a, b):
    return -(-a // b) * b


def _row_multiple(itemsize):
    # Full sublane packing: 8 rows (32-bit), 16 (bf16/fp16), 32 (8-bit dtypes).
    return max(8, 32 // max(int(itemsize), 1))


def _vmem_params():
    """Per-generation (vmem_limit_bytes, double-buffered tile byte budget)."""
    # Safe defaults for v7x (64 MiB physical VMEM per TensorCore) — also used
    # when get_tpu_info() is unavailable; they are valid on every generation.
    limit, budget = 48 * _MIB, 24 * _MIB
    try:
        cap = int(getattr(pltpu.get_tpu_info(), "vmem_capacity_bytes"))
        if cap >= 96 * _MIB:            # v5e / v6e: 128 MiB physical VMEM
            limit, budget = 64 * _MIB, 44 * _MIB
    except Exception:
        pass
    return limit, budget


def _pick_tile_n(h_dim, itemsize, budget):
    """Feature-tile width for the lane-aligned path (H % 128 == 0).

    Prefer the full half width H (maximal contiguous DMA per row, feature grid
    of 1).  Only when even a minimum-height (row_mult) block would blow the
    VMEM budget do we fall back to the widest multiple-of-128 divisor of H.
    """
    row_mult = _row_multiple(itemsize)
    # Double-buffered bytes per feature element at minimum tile height:
    # 2 buffers * (h + t + out) * row_mult rows.
    max_n = budget // (6 * row_mult * itemsize)
    max_n = max(128, (max_n // 128) * 128)
    if h_dim <= max_n:
        return h_dim
    best = 128
    for cand in range(128, max_n + 1, 128):
        if h_dim % cand == 0:
            best = cand
    return best


def _pick_tile_m(m, tile_n, itemsize, budget):
    """Row-tile height: byte-budget-capped, sublane-packed, >= a few row blocks."""
    row_mult = _row_multiple(itemsize)
    per_row = 6 * tile_n * int(itemsize)   # 2 buffers * (h + t + out) bytes / row
    tile_m = max(row_mult, (budget // max(per_row, 1)) // row_mult * row_mult)
    # Keep enough row blocks for DMA/compute overlap and for v7x's 2 TensorCores.
    target_blocks = max(1, min(_MIN_ROW_BLOCKS, pl.cdiv(m, row_mult)))
    cap = _round_up(pl.cdiv(m, target_blocks), row_mult)
    return max(row_mult, min(tile_m, cap))


# ---------------------------------------------------------------------------
# Wrapper
# ---------------------------------------------------------------------------

def glu_act(x):
    """sigmoid(h) * t where (h, t) = tensor_split(x, 2, dim=-1).  x: [..., 2H]."""
    orig_shape = x.shape
    two_h = orig_shape[-1]
    assert two_h % 2 == 0, "last dim must be even (tensor_split(2) with even size)"
    h_dim = two_h // 2
    itemsize = jnp.dtype(x.dtype).itemsize

    m = math.prod(orig_shape[:-1]) if len(orig_shape) > 1 else 1
    x2d = x.reshape(m, two_h)

    vmem_limit, budget = _vmem_params()

    if h_dim % 128 == 0:
        # Lane-aligned path: the two halves are fed as two lane-aligned input
        # blocks of the SAME array (feature block j and j + n_feat).
        tile_n = _pick_tile_n(h_dim, itemsize, budget)
        n_feat = h_dim // tile_n
        tile_m = _pick_tile_m(m, tile_n, itemsize, budget)
        grid = (pl.cdiv(m, tile_m), n_feat)

        # NOTE: if a v7x profile still shows exposed input DMA after the wide
        # tiles, add pipeline_mode=pl.Buffered(3) to the two input BlockSpecs.
        out2d = pl.pallas_call(
            _glu_split_kernel,
            out_shape=jax.ShapeDtypeStruct((m, h_dim), x.dtype),
            grid_spec=pltpu.PrefetchScalarGridSpec(
                num_scalar_prefetch=0,
                grid=grid,
                in_specs=[
                    # h half: feature block j.
                    pl.BlockSpec((tile_m, tile_n), lambda i, j: (i, j)),
                    # t half: feature block j + H/tile_n (second half of the array).
                    pl.BlockSpec((tile_m, tile_n), lambda i, j: (i, j + n_feat)),
                ],
                out_specs=pl.BlockSpec((tile_m, tile_n), lambda i, j: (i, j)),
            ),
            compiler_params=pltpu.CompilerParams(
                dimension_semantics=("parallel", "parallel"),
                vmem_limit_bytes=vmem_limit,
            ),
        )(x2d, x2d)
    else:
        # H not a multiple of 128: single full-width (tile_m, 2H) block, sliced
        # in-kernel (legal since 2H / H equal the full array dims).
        tile_m = _pick_tile_m(m, h_dim, itemsize, budget)
        needed = 6 * h_dim * itemsize * tile_m      # double-buffered footprint
        if needed > budget:
            # Very wide, non-aligned H: raise the limit so it still compiles.
            # TODO(synk): shapes whose minimum footprint exceeds physical VMEM
            # would need a wrapper-side pad-to-128 realignment.
            vmem_limit = max(vmem_limit, int(needed) + 4 * _MIB)
        grid = (pl.cdiv(m, tile_m),)

        out2d = pl.pallas_call(
            _glu_fused_kernel,
            out_shape=jax.ShapeDtypeStruct((m, h_dim), x.dtype),
            grid_spec=pltpu.PrefetchScalarGridSpec(
                num_scalar_prefetch=0,
                grid=grid,
                in_specs=[pl.BlockSpec((tile_m, two_h), lambda i: (i, 0))],
                out_specs=pl.BlockSpec((tile_m, h_dim), lambda i: (i, 0)),
            ),
            compiler_params=pltpu.CompilerParams(
                dimension_semantics=("parallel",),
                vmem_limit_bytes=vmem_limit,
            ),
        )(x2d)

    return out2d.reshape(*orig_shape[:-1], h_dim)


# ---------------------------------------------------------------------------
# Demo / correctness check
# ---------------------------------------------------------------------------

if __name__ == "__main__":
    def ref_glu(x):
        h, t = jnp.split(x, 2, axis=-1)
        return jax.nn.sigmoid(h) * t

    key = jax.random.PRNGKey(0)
    k1, k2, k3 = jax.random.split(key, 3)

    # Small module-consistent shape (H = 32): exercises the fused fallback path.
    x1 = jax.random.normal(k1, (2, 8, 64), dtype=jnp.float32)
    out1 = jax.block_until_ready(glu_act(x1))
    ref1 = ref_glu(x1)
    assert out1.shape == ref1.shape == (2, 8, 32)
    assert jnp.allclose(out1, ref1, atol=1e-6, rtol=1e-6)

    # Lane-aligned shape (H = 128), rows not a multiple of the row tile:
    # exercises the two-input split path + masked partial row block.
    x2 = jax.random.normal(k2, (3, 20, 256), dtype=jnp.float32)
    out2 = jax.block_until_ready(glu_act(x2))
    ref2 = ref_glu(x2)
    assert out2.shape == ref2.shape == (3, 20, 128)
    assert jnp.allclose(out2, ref2, atol=1e-6, rtol=1e-6)

    # bf16, lane-aligned (H = 256): exercises 16-row sublane packing.
    x3 = jax.random.normal(k3, (4, 16, 512), dtype=jnp.bfloat16)
    out3 = jax.block_until_ready(glu_act(x3))
    ref3 = ref_glu(x3.astype(jnp.float32))
    assert out3.shape == (4, 16, 256)
    assert jnp.allclose(out3.astype(jnp.float32), ref3, atol=2e-2, rtol=2e-2)

    print("KERNEL_OK")
</pallas_src>

<mosaic_0001>
module attributes {stable_mosaic.version = 11 : i64} {
  func.func @_glu_fused_kernel(%arg0: i32, %arg1: memref<8x64xf32, #tpu.memory_space<vmem>>, %arg2: memref<8x32xf32, #tpu.memory_space<vmem>>) attributes {dimension_semantics = [#tpu.dimension_semantics<parallel>], iteration_bounds = array<i64: 2>, scalar_prefetch = 0 : i64, scratch_operands = 0 : i64, tpu.core_type = #tpu.core_type<tc>, window_params = [{transform_indices = @transform_0, window_bounds = array<i64: 8, 64>}, {transform_indices = @transform_1, window_bounds = array<i64: 8, 32>}]} {
    %c0 = arith.constant 0 : index
    %c0_0 = arith.constant 0 : index
    %0 = vector.load %arg1[%c0, %c0_0] : memref<8x64xf32, #tpu.memory_space<vmem>>, vector<8x32xf32>
    %c0_1 = arith.constant 0 : index
    %c32 = arith.constant 32 : index
    %1 = vector.load %arg1[%c0_1, %c32] : memref<8x64xf32, #tpu.memory_space<vmem>>, vector<8x32xf32>
    %2 = arith.negf %0 : vector<8x32xf32>
    %3 = math.exp %2 : vector<8x32xf32>
    %cst = arith.constant 1.000000e+00 : f32
    %4 = vector.broadcast %cst : f32 to vector<8x32xf32>
    %5 = arith.addf %4, %3 : vector<8x32xf32>
    %6 = arith.divf %4, %5 : vector<8x32xf32>
    %7 = arith.mulf %6, %1 : vector<8x32xf32>
    %c0_2 = arith.constant 0 : index
    %c0_3 = arith.constant 0 : index
    %8 = vector.load %arg2[%c0_2, %c0_3] : memref<8x32xf32, #tpu.memory_space<vmem>>, vector<8x32xf32>
    tpu.vector_store %arg2[%c0_2, %c0_3], %7 {strides = array<i32>} : memref<8x32xf32, #tpu.memory_space<vmem>>, vector<8x32xf32>,
    return
  }
  func.func @transform_0(%arg0: i32) -> (i32, i32) {
    %c0_i32 = arith.constant 0 : i32
    %c0_i32_0 = arith.constant 0 : i32
    return %arg0, %c0_i32 : i32, i32
  }
  func.func @transform_1(%arg0: i32) -> (i32, i32) {
    %c0_i32 = arith.constant 0 : i32
    %c0_i32_0 = arith.constant 0 : i32
    return %arg0, %c0_i32 : i32, i32
  }
}

</mosaic_0001>

<llo_original>
// kernel: tpu_custom_call.1
$region0: #{tpu_custom_call.1}
  #allocation0 [shape = 'u32[]', space=smem, size = 0x4, offset = 0x4, fixed_abs, tag = 'smem constant byte address 0x4 - core index']
  #allocation1 [shape = 'u32[144,128]{1,0:T(1,128)}', space=vmem, size = 0x12000, scoped, tag = 'internal scratch']
  %s0 = inlined_call_operand.hbm [shape: f32[16,64], index: 0, kind: input, shape index: {}]
  %s1 = inlined_call_operand.hbm [shape: f32[16,32], index: 1, kind: output, shape index: {}]
  %s2 = sld [smem:[#allocation0]]
  $region41: #{tpu_custom_call.1} parent=0
    _
  %s4 = ssub.s32 1, %s2
  %s5 = scalar_select 0, %s4, %s2
  $region1: #{tpu_custom_call.1} parent=0
    #allocation2 [shape = 'u8[8192]{0}', space=vmem, size = 0x2000, scoped, tag = 'input window, operand 0']
    #allocation3 [shape = 's32[2]{0}', space=sflag, size = 0x8, scoped, tag = 'scoped memory for tpu_custom_call.1']
    #allocation4 [shape = 's32[2]{0}', space=sflag, size = 0x8, scoped, tag = 'scoped memory for tpu_custom_call.1']
    #allocation5 [shape = 'u8[8192]{0}', space=vmem, size = 0x2000, scoped, tag = 'output window, operand 0']
    %6 = vsyncpa [#allocation3], 0
    %s7 = scalar_lea.sflag [#allocation3], 1
    %8 = vsyncpa %s7, 0
    %9 = vsyncpa [#allocation4], 0
    %s10 = scalar_lea.sflag [#allocation4], 1
    %11 = vsyncpa %s10, 0
    loop: start=0, step=1, limit=4
    $region2: #{tpu_custom_call.1} parent=1 // loop_pre_header
      _
    $region3: #{tpu_custom_call.1} parent=1 // loop_header
      %s13 = sphi 0, %s17
      %p14 = scmp.ge.s32.totalorder %s13, 4
      %s23 = sphi 0, %s25
      %s26 = sphi 0, %s23
      %s27 = sphi 0, %s26
      %s43 = sphi 0, %s27
      %s49 = sphi 0, %s51
      %s52 = sphi 0, %s49
      %s53 = sphi 0, %s52
      %s69 = sphi 0, %s53
    $region4: #{tpu_custom_call.1} parent=1 // loop_header_branch
      %16 = sbr.rel (%p14) target = $region8
    $region5: #{tpu_custom_call.1} parent=1 // loop_body
      %s18 = ssub.s32 %s13, 1
      %s19 = ssub.s32 %s13, 2
      %s20 = sadd.s32 %s13, 1
      %s21 = ssub.s32 %s13, %s20
      %p22 = scmp.eq.s32.totalorder %s21, 0
      %s24 = sadd.s32 %s23, 1
      %s25 = scalar_select %p22, %s23, %s24
      %p28 = pneg %p22
      %p29 = scmp.eq.s32.totalorder %s13, 1
      %p30 = por %p28, %p29
      %p31 = scmp.ne.s32.totalorder %s23, %s26
      %p32 = scmp.eq.s32.totalorder %s13, 0
      %p33 = por %p31, %p32
      %p34 = scmp.ne.s32.totalorder %s23, %s26
      %p35 = scmp.eq.s32.totalorder %s18, 1
      %p36 = por %p34, %p35
      %p37 = scmp.ne.s32.totalorder %s26, %s27
      %p38 = scmp.eq.s32.totalorder %s18, 0
      %p39 = por %p37, %p38
      %p40 = scmp.ne.s32.totalorder %s26, %s27
      %p41 = scmp.eq.s32.totalorder %s19, 1
      %p42 = por %p40, %p41
      %p44 = scmp.ne.s32.totalorder %s27, %s43
      %p45 = scmp.eq.s32.totalorder %s19, 0
      %p46 = por %p44, %p45
      %s47 = ssub.s32 %s13, %s20
      %p48 = scmp.eq.s32.totalorder %s47, 0
      %s50 = sadd.s32 %s49, 1
      %s51 = scalar_select %p48, %s49, %s50
      %p54 = pneg %p48
      %p55 = scmp.eq.s32.totalorder %s13, 1
      %p56 = por %p54, %p55
      %p57 = scmp.ne.s32.totalorder %s49, %s52
      %p58 = scmp.eq.s32.totalorder %s13, 0
      %p59 = por %p57, %p58
      %p60 = scmp.ne.s32.totalorder %s49, %s52
      %p61 = scmp.eq.s32.totalorder %s18, 1
      %p62 = por %p60, %p61
      %p63 = scmp.ne.s32.totalorder %s52, %s53
      %p64 = scmp.eq.s32.totalorder %s18, 0
      %p65 = por %p63, %p64
      %p66 = scmp.ne.s32.totalorder %s52, %s53
      %p67 = scmp.eq.s32.totalorder %s19, 1
      %p68 = por %p66, %p67
      %p70 = scmp.ne.s32.totalorder %s53, %s69
      %p71 = scmp.eq.s32.totalorder %s19, 0
      %p72 = por %p70, %p71
      %p73 = scmp.le.s32.totalorder 1, %s13
      %p74 = scmp.lt.s32.totalorder %s13, 3
      %p75 = pnand %p73, %p74
      %p76 = pneg %p75
      // Predicated region
      $region9: #{tpu_custom_call.1} parent=5 // pred_check
        _
      $region10: #{tpu_custom_call.1} parent=5 // pred_check_branch
        %78 = sbr.rel (%p75) target = $region12
      $region11: #{tpu_custom_call.1} parent=5 // pred_region
        %s79 = ssub.s32 %s13, 1
      $region12: #{tpu_custom_call.1} parent=5 // pred_fallthru
        _
      %p80 = scmp.lt.s32.totalorder %s13, 2
      // Predicated region
      $region13: #{tpu_custom_call.1} parent=5 // pred_check
        %p81 = pneg %p80
      $region14: #{tpu_custom_call.1} parent=5 // pred_check_branch
        %83 = sbr.rel (%p81) target = $region16
      $region15: #{tpu_custom_call.1} parent=5 // pred_region
        // Predicated region
        $region17: #{tpu_custom_call.1} parent=15 // pred_check
          %p84 = pneg %p33
        $region18: #{tpu_custom_call.1} parent=15 // pred_check_branch
          %86 = sbr.rel (%p84) target = $region20
        $region19: #{tpu_custom_call.1} parent=15 // pred_region
          %s87 = sand.u32 %s23, 1
          %s88 = scalar_lea.sflag [#allocation3], %s87
          %s89 = sand.u32 %s23, 1
          %s90 = smul.addr %s89, 8
          %s91 = scalar_lea.vmem [#allocation2], %s90
          %s93 = ssub.s32 128, 128
          %94 = vsyncadd %s88, %s93
          %s95 = smul.addr %s13, 128
          %s96 = scalar_lea.hbm %s0, %s95
          %s98 = sshll.u32 %s91, 4
          %s99 = int_to_ptr.vmem [resolvable:$true] %s98
          %101 = dma.hbm_to_vmem [thread:$0]  %s96, 128, %s99, %s88
        $region20: #{tpu_custom_call.1} parent=15 // pred_fallthru
          _
      $region16: #{tpu_custom_call.1} parent=5 // pred_fallthru
        _
      %p102 = scmp.le.s32.totalorder 1, %s13
      %p103 = scmp.lt.s32.totalorder %s13, 3
      %p104 = pnand %p102, %p103
      %p105 = pneg %p104
      // Predicated region
      $region21: #{tpu_custom_call.1} parent=5 // pred_check
        _
      $region22: #{tpu_custom_call.1} parent=5 // pred_check_branch
        %107 = sbr.rel (%p104) target = $region24
      $region23: #{tpu_custom_call.1} parent=5 // pred_region
        %s108 = ssub.s32 %s13, 1
        %s109 = sand.u32 %s26, 1
        %s110 = scalar_lea.sflag [#allocation3], %s109
        %s111 = sand.u32 %s26, 1
        %s112 = smul.addr %s111, 8
        %s113 = scalar_lea.vmem [#allocation2], %s112
        // Predicated region
        $region25: #{tpu_custom_call.1} parent=23 // pred_check
          %p114 = pneg %p39
        $region26: #{tpu_custom_call.1} parent=23 // pred_check_branch
          %116 = sbr.rel (%p114) target = $region28
        $region27: #{tpu_custom_call.1} parent=23 // pred_region
          %117 = dma.done %s110, 128
        $region28: #{tpu_custom_call.1} parent=23 // pred_fallthru
          _
        %s118 = sand.u32 %s26, 1
        %s119 = scalar_lea.sflag [#allocation3], %s118
        %s120 = sand.u32 %s26, 1
        %s121 = smul.addr %s120, 8
        %s122 = scalar_lea.vmem [#allocation2], %s121
        %p123 = pneg %p39
        %p124 = pneg %p36
        %p125 = pneg %p65
        %p126 = pneg %p62
        %s127 = sand.u32 %s52, 1
        %s128 = scalar_lea.sflag [#allocation4], %s127
        %s129 = sand.u32 %s52, 1
        %s130 = smul.addr %s129, 8
        %s131 = scalar_lea.vmem [#allocation5], %s130
        %v132 = vld [vmem:[%s113] sm:$0xff]
        %v133 = vxor.u32 %v132, 2147483648
        %v134 = vmul.f32 %v133, 1.442695
        %v135 = vpow.pop %v134
        %v136 = vadd.f32 %v135, 1.0
        %v137 = vrcp.pop %v136
        %v138 = vmul.f32 1.0, %v137
        %140 = vrot.lane.b32.xlu0 %v132, 96
        %v141 = vpop.permute.xlu0 %140
        %v143 = vmul.f32 %v138, %v141
        %vm144 = vcmask 261120
        %145 = vst.msk [vmem:[%s131] sm:$0xff] %vm144, %v143
        %s146 = sand.u32 %s52, 1
        %s147 = scalar_lea.sflag [#allocation4], %s146
        %s148 = sand.u32 %s52, 1
        %s149 = smul.addr %s148, 8
        %s150 = scalar_lea.vmem [#allocation5], %s149
        // Predicated region
        $region29: #{tpu_custom_call.1} parent=23 // pred_check
          %p151 = pneg %p62
        $region30: #{tpu_custom_call.1} parent=23 // pred_check_branch
          %153 = sbr.rel (%p151) target = $region32
        $region31: #{tpu_custom_call.1} parent=23 // pred_region
          %s155 = ssub.s32 128, 128
          %156 = vsyncadd %s147, %s155
          %s157 = smul.addr %s18, 128
          %s158 = scalar_lea.hbm %s1, %s157
          %s160 = sshll.u32 %s150, 4
          %s161 = int_to_ptr.vmem [resolvable:$true] %s160
          %163 = dma.vmem_to_hbm [thread:$0]  %s161, 128, %s158, %s147
        $region32: #{tpu_custom_call.1} parent=23 // pred_fallthru
          _
      $region24: #{tpu_custom_call.1} parent=5 // pred_fallthru
        _
      %p164 = scmp.le.s32.totalorder 2, %s13
      // Predicated region
      $region33: #{tpu_custom_call.1} parent=5 // pred_check
        %p165 = pneg %p164
      $region34: #{tpu_custom_call.1} parent=5 // pred_check_branch
        %167 = sbr.rel (%p165) target = $region36
      $region35: #{tpu_custom_call.1} parent=5 // pred_region
        %s168 = ssub.s32 %s13, 2
        // Predicated region
        $region37: #{tpu_custom_call.1} parent=35 // pred_check
          %p169 = pneg %p68
        $region38: #{tpu_custom_call.1} parent=35 // pred_check_branch
          %171 = sbr.rel (%p169) target = $region40
        $region39: #{tpu_custom_call.1} parent=35 // pred_region
          %s172 = sand.u32 %s53, 1
          %s173 = scalar_lea.sflag [#allocation4], %s172
          %s174 = sand.u32 %s53, 1
          %s175 = smul.addr %s174, 8
          %s176 = scalar_lea.vmem [#allocation5], %s175
          %177 = dma.done %s173, 128
        $region40: #{tpu_custom_call.1} parent=35 // pred_fallthru
          _
      $region36: #{tpu_custom_call.1} parent=5 // pred_fallthru
        _
    $region6: #{tpu_custom_call.1} parent=1 // loop_footer
      %s17 = sadd.s32 1, %s13
    $region7: #{tpu_custom_call.1} parent=1 // loop_footer_branch
      %12 = sbr.rel target = $region3
    $region8: #{tpu_custom_call.1} parent=1 // loop_exit
      _
    %178 = vsyncpa [#allocation3], 1
    %s179 = scalar_lea.sflag [#allocation3], 1
    %180 = vsyncpa %s179, 1
    %181 = vsyncpa [#allocation4], 1
    %s182 = scalar_lea.sflag [#allocation4], 1
    %183 = vsyncpa %s182, 1

</llo_original>
